<compile_context>
chip_gen: v7x
topology: tpu7x:2x2x1
jax: 0.10.0
libtpu: 0.0.40
codegen_flags: <defaults>
</compile_context>

<pallas_src>
import numpy as np
import jax
import jax.numpy as jnp
from jax.experimental import pallas as pl
from jax.experimental.pallas import tpu as pltpu


# ----------------------------------------------------------------------------
# Kernel: one fused gcn_spa layer, everything resident in VMEM / vregs.
# ----------------------------------------------------------------------------
def gcn_spa_kernel(xT_ref, gT_ref, w_ref, w1_ref, b_ref, gamma_ref, beta_ref,
                   o_ref):
    xT = xT_ref[...]                          # (Cin, R)   R = N*T*V on lanes
    gT = gT_ref[...]                          # (R, R)     block-diag, blocks transposed
    inv_r = 1.0 / xT.shape[1]                 # static
    eps = 1e-5                                # nn.BatchNorm2d default

    # Batched graph matmul for all (n, t) blocks at once: one MXU issue.
    yT = jnp.dot(xT, gT, preferred_element_type=jnp.float32)          # (Cin, R)

    # Fused 1x1 convs:  W @ yT + W1 @ xT  (+ optional bias of w1), f32 accumulate.
    zT = (jnp.dot(w_ref[...], yT, preferred_element_type=jnp.float32)
          + jnp.dot(w1_ref[...], xT, preferred_element_type=jnp.float32)
          + b_ref[...])                                                # (Cout, R)

    # Training-mode BatchNorm2d: per-channel stats over (N, V, T) == the lane axis.
    mean = jnp.sum(zT, axis=1, keepdims=True) * inv_r                  # (Cout, 1)
    d = zT - mean
    var = jnp.sum(d * d, axis=1, keepdims=True) * inv_r                # biased var
    zn = d * (gamma_ref[...] * jax.lax.rsqrt(var + eps)) + beta_ref[...]
    o_ref[...] = jnp.maximum(zn, 0.0)                                  # ReLU


# ----------------------------------------------------------------------------
# Wrapper: layout prep (N,C,V,T) -> (C, N*T*V), block-diagonal graph, params.
# ----------------------------------------------------------------------------
def gcn_spa_forward(x1, g, W, W1, b1, gamma, beta):
    N, Cin, V, T = x1.shape
    B = N * T
    R = B * V
    Cout = W.shape[0]

    # (N, C, V, T) -> (C, N*T*V): channels on sublanes, flattened (n,t,v) on lanes.
    xT = jnp.transpose(x1, (1, 0, 3, 2)).reshape(Cin, R).astype(jnp.float32)

    # Block-diagonal, per-block-transposed graph so yT = xT @ gT_bd performs all
    # N*T per-(n,t) graph matmuls as a single MXU matmul.
    gb = jnp.transpose(g, (0, 1, 3, 2)).reshape(B, V, V).astype(jnp.float32)
    eye = jnp.eye(B, dtype=jnp.float32)
    gT_bd = (eye[:, None, :, None] * gb[:, :, None, :]).reshape(R, R)

    col = lambda v: v.reshape(-1, 1).astype(jnp.float32)

    vmem = pl.BlockSpec(memory_space=pltpu.MemorySpace.VMEM)
    oT = pl.pallas_call(
        gcn_spa_kernel,
        out_shape=jax.ShapeDtypeStruct((Cout, R), jnp.float32),
        in_specs=[vmem] * 7,
        out_specs=vmem,
    )(xT, gT_bd,
      W.astype(jnp.float32), W1.astype(jnp.float32),
      col(b1), col(gamma), col(beta))

    # (Cout, N*T*V) -> (N, Cout, V, T)
    return jnp.transpose(oT.reshape(Cout, N, T, V), (1, 0, 3, 2))


# ----------------------------------------------------------------------------
# Pure-JAX reference mirroring the PyTorch module (training-mode BN).
# ----------------------------------------------------------------------------
def gcn_spa_ref(x1, g, W, W1, b1, gamma, beta, eps=1e-5):
    xp = jnp.transpose(x1, (0, 3, 2, 1))               # (N, T, V, C)
    y = jnp.einsum('ntvu,ntuc->ntvc', g, xp)
    y = jnp.transpose(y, (0, 3, 2, 1))                  # (N, C, V, T)
    z = (jnp.einsum('oc,ncvt->novt', W, y)
         + jnp.einsum('oc,ncvt->novt', W1, x1)
         + b1[None, :, None, None])
    mean = z.mean(axis=(0, 2, 3), keepdims=True)
    var = ((z - mean) ** 2).mean(axis=(0, 2, 3), keepdims=True)
    zn = (z - mean) / jnp.sqrt(var + eps)
    zn = zn * gamma[None, :, None, None] + beta[None, :, None, None]
    return jnp.maximum(zn, 0.0)


if __name__ == "__main__":
    # Small, module-consistent shapes chosen so the lane axis N*T*V = 128
    # (lane-dense output stores) and all channel counts are multiples of 8.
    N, T, V = 2, 4, 16          # batch, temporal segments, joints
    Cin, Cout = 32, 64          # in_feature, out_feature

    key = jax.random.PRNGKey(0)
    ks = jax.random.split(key, 6)

    # Conv2d 1x1 weights squeezed to (Cout, Cin); gcn_spa.w has no bias,
    # gcn_spa.w1 bias exercised (bias=True path).
    W     = jax.random.normal(ks[0], (Cout, Cin), jnp.float32) * 0.1
    W1    = jax.random.normal(ks[1], (Cout, Cin), jnp.float32) * 0.1
    b1    = jax.random.normal(ks[2], (Cout,), jnp.float32) * 0.1
    gamma = jnp.ones((Cout,), jnp.float32)
    beta  = jnp.zeros((Cout,), jnp.float32)

    x = jax.random.normal(ks[3], (N, Cin, V, T), jnp.float32)   # (N, C, V, T)
    g = jax.random.normal(ks[4], (N, T, V, V), jnp.float32)     # (N, T, V, V)

    out = jax.jit(gcn_spa_forward)(x, g, W, W1, b1, gamma, beta)
    out = jax.block_until_ready(out)

    ref = gcn_spa_ref(x, g, W, W1, b1, gamma, beta)
    np.testing.assert_allclose(np.asarray(out), np.asarray(ref),
                               rtol=1e-3, atol=1e-3)

    print("KERNEL_OK")
</pallas_src>

<mosaic_0001>
module attributes {stable_mosaic.version = 11 : i64} {
  func.func @gcn_spa_kernel(%arg0: memref<32x128xf32, #tpu.memory_space<vmem>>, %arg1: memref<128x128xf32, #tpu.memory_space<vmem>>, %arg2: memref<64x32xf32, #tpu.memory_space<vmem>>, %arg3: memref<64x32xf32, #tpu.memory_space<vmem>>, %arg4: memref<64x1xf32, #tpu.memory_space<vmem>>, %arg5: memref<64x1xf32, #tpu.memory_space<vmem>>, %arg6: memref<64x1xf32, #tpu.memory_space<vmem>>, %arg7: memref<64x128xf32, #tpu.memory_space<vmem>>) attributes {dimension_semantics = [], scalar_prefetch = 0 : i64, scratch_operands = 0 : i64, tpu.core_type = #tpu.core_type<tc>} {
    %c0 = arith.constant 0 : index
    %c0_0 = arith.constant 0 : index
    %0 = vector.load %arg0[%c0, %c0_0] : memref<32x128xf32, #tpu.memory_space<vmem>>, vector<32x128xf32>
    %c0_1 = arith.constant 0 : index
    %c0_2 = arith.constant 0 : index
    %1 = vector.load %arg1[%c0_1, %c0_2] : memref<128x128xf32, #tpu.memory_space<vmem>>, vector<128x128xf32>
    %cst = arith.constant dense<0.000000e+00> : vector<32x128xf32>
    %2 = tpu.matmul %0, %1, %cst {dimension_numbers = #tpu.dot_dimension_numbers<[1], [0], [0], [1], [0, 0, 1, 1], [], []>} : vector<32x128xf32>, vector<128x128xf32>, vector<32x128xf32> -> vector<32x128xf32>
    %c0_3 = arith.constant 0 : index
    %c0_4 = arith.constant 0 : index
    %3 = vector.load %arg2[%c0_3, %c0_4] : memref<64x32xf32, #tpu.memory_space<vmem>>, vector<64x32xf32>
    %cst_5 = arith.constant dense<0.000000e+00> : vector<64x128xf32>
    %4 = tpu.matmul %3, %2, %cst_5 {dimension_numbers = #tpu.dot_dimension_numbers<[1], [0], [0], [1], [0, 0, 1, 1], [], []>} : vector<64x32xf32>, vector<32x128xf32>, vector<64x128xf32> -> vector<64x128xf32>
    %c0_6 = arith.constant 0 : index
    %c0_7 = arith.constant 0 : index
    %5 = vector.load %arg3[%c0_6, %c0_7] : memref<64x32xf32, #tpu.memory_space<vmem>>, vector<64x32xf32>
    %cst_8 = arith.constant dense<0.000000e+00> : vector<64x128xf32>
    %6 = tpu.matmul %5, %0, %cst_8 {dimension_numbers = #tpu.dot_dimension_numbers<[1], [0], [0], [1], [0, 0, 1, 1], [], []>} : vector<64x32xf32>, vector<32x128xf32>, vector<64x128xf32> -> vector<64x128xf32>
    %7 = arith.addf %4, %6 : vector<64x128xf32>
    %c0_9 = arith.constant 0 : index
    %c0_10 = arith.constant 0 : index
    %8 = vector.load %arg4[%c0_9, %c0_10] : memref<64x1xf32, #tpu.memory_space<vmem>>, vector<64x1xf32>
    %9 = vector.broadcast %8 : vector<64x1xf32> to vector<64x128xf32>
    %10 = arith.addf %7, %9 : vector<64x128xf32>
    %cst_11 = arith.constant dense<0.000000e+00> : vector<64xf32>
    %11 = vector.multi_reduction <add>, %10, %cst_11 [1] : vector<64x128xf32> to vector<64xf32>
    %12 = vector.shape_cast %11 : vector<64xf32> to vector<64x1xf32>
    %cst_12 = arith.constant 7.812500e-03 : f32
    %13 = vector.broadcast %cst_12 : f32 to vector<64x1xf32>
    %14 = arith.mulf %12, %13 : vector<64x1xf32>
    %15 = vector.broadcast %14 : vector<64x1xf32> to vector<64x128xf32>
    %16 = arith.subf %10, %15 : vector<64x128xf32>
    %17 = arith.mulf %16, %16 : vector<64x128xf32>
    %cst_13 = arith.constant dense<0.000000e+00> : vector<64xf32>
    %18 = vector.multi_reduction <add>, %17, %cst_13 [1] : vector<64x128xf32> to vector<64xf32>
    %19 = vector.shape_cast %18 : vector<64xf32> to vector<64x1xf32>
    %cst_14 = arith.constant 7.812500e-03 : f32
    %20 = vector.broadcast %cst_14 : f32 to vector<64x1xf32>
    %21 = arith.mulf %19, %20 : vector<64x1xf32>
    %c0_15 = arith.constant 0 : index
    %c0_16 = arith.constant 0 : index
    %22 = vector.load %arg5[%c0_15, %c0_16] : memref<64x1xf32, #tpu.memory_space<vmem>>, vector<64x1xf32>
    %cst_17 = arith.constant 9.99999974E-6 : f32
    %23 = vector.broadcast %cst_17 : f32 to vector<64x1xf32>
    %24 = arith.addf %21, %23 : vector<64x1xf32>
    %25 = math.rsqrt %24 : vector<64x1xf32>
    %26 = arith.mulf %22, %25 : vector<64x1xf32>
    %27 = vector.broadcast %26 : vector<64x1xf32> to vector<64x128xf32>
    %28 = arith.mulf %16, %27 : vector<64x128xf32>
    %c0_18 = arith.constant 0 : index
    %c0_19 = arith.constant 0 : index
    %29 = vector.load %arg6[%c0_18, %c0_19] : memref<64x1xf32, #tpu.memory_space<vmem>>, vector<64x1xf32>
    %30 = vector.broadcast %29 : vector<64x1xf32> to vector<64x128xf32>
    %31 = arith.addf %28, %30 : vector<64x128xf32>
    %cst_20 = arith.constant 0.000000e+00 : f32
    %32 = vector.broadcast %cst_20 : f32 to vector<64x128xf32>
    %33 = arith.maximumf %31, %32 : vector<64x128xf32>
    %c0_21 = arith.constant 0 : index
    %c0_22 = arith.constant 0 : index
    %34 = vector.load %arg7[%c0_21, %c0_22] : memref<64x128xf32, #tpu.memory_space<vmem>>, vector<64x128xf32>
    tpu.vector_store %arg7[%c0_21, %c0_22], %33 {strides = array<i32>} : memref<64x128xf32, #tpu.memory_space<vmem>>, vector<64x128xf32>,
    return
  }
}

</mosaic_0001>

<llo_original>
// kernel: gcn_spa_forward.1
$region0: #{gcn_spa_forward.1}
  #allocation0 [shape = 'u32[]', space=smem, size = 0x4, offset = 0x4, fixed_abs, tag = 'smem constant byte address 0x4 - core index']
  #allocation1 [shape = 'u32[144,128]{1,0:T(1,128)}', space=vmem, size = 0x12000, scoped, tag = 'internal scratch']
  %s0 = inlined_call_operand.vmem [shape: f32[32,128], index: 0, kind: input, shape index: {}]
  %s1 = inlined_call_operand.vmem [shape: f32[128,128], index: 1, kind: input, shape index: {}]
  %s2 = inlined_call_operand.vmem [shape: f32[64,32], index: 2, kind: input, shape index: {}]
  %s3 = inlined_call_operand.vmem [shape: f32[64,32], index: 3, kind: input, shape index: {}]
  %s4 = inlined_call_operand.vmem [shape: f32[64,1], index: 4, kind: input, shape index: {}]
  %s5 = inlined_call_operand.vmem [shape: f32[64,1], index: 5, kind: input, shape index: {}]
  %s6 = inlined_call_operand.vmem [shape: f32[64,1], index: 6, kind: input, shape index: {}]
  %s7 = inlined_call_operand.vmem [shape: f32[64,128], index: 7, kind: output, shape index: {}]
  %s8 = sld [smem:[#allocation0]]
  $region38: #{gcn_spa_forward.1} parent=0
    _
  %s10 = ssub.s32 1, %s8
  %s11 = scalar_select 0, %s10, %s8
  // Predicated region
  $region2: #{gcn_spa_forward.1} parent=0 // pred_check
    _
  $region3: #{gcn_spa_forward.1} parent=0 // pred_check_branch
    %13 = sbr.rel (0) target = $region5
  $region4: #{gcn_spa_forward.1} parent=0 // pred_region
    _
  $region5: #{gcn_spa_forward.1} parent=0 // pred_fallthru
    _
  // Predicated region
  $region6: #{gcn_spa_forward.1} parent=0 // pred_check
    _
  $region7: #{gcn_spa_forward.1} parent=0 // pred_check_branch
    %15 = sbr.rel (0) target = $region9
  $region8: #{gcn_spa_forward.1} parent=0 // pred_region
    _
  $region9: #{gcn_spa_forward.1} parent=0 // pred_fallthru
    _
  // Predicated region
  $region10: #{gcn_spa_forward.1} parent=0 // pred_check
    _
  $region11: #{gcn_spa_forward.1} parent=0 // pred_check_branch
    %17 = sbr.rel (0) target = $region13
  $region12: #{gcn_spa_forward.1} parent=0 // pred_region
    _
  $region13: #{gcn_spa_forward.1} parent=0 // pred_fallthru
    _
  // Predicated region
  $region14: #{gcn_spa_forward.1} parent=0 // pred_check
    _
  $region15: #{gcn_spa_forward.1} parent=0 // pred_check_branch
    %19 = sbr.rel (0) target = $region17
  $region16: #{gcn_spa_forward.1} parent=0 // pred_region
    _
  $region17: #{gcn_spa_forward.1} parent=0 // pred_fallthru
    _
  // Predicated region
  $region18: #{gcn_spa_forward.1} parent=0 // pred_check
    _
  $region19: #{gcn_spa_forward.1} parent=0 // pred_check_branch
    %21 = sbr.rel (0) target = $region21
  $region20: #{gcn_spa_forward.1} parent=0 // pred_region
    _
  $region21: #{gcn_spa_forward.1} parent=0 // pred_fallthru
    _
  // Predicated region
  $region22: #{gcn_spa_forward.1} parent=0 // pred_check
    _
  $region23: #{gcn_spa_forward.1} parent=0 // pred_check_branch
    %23 = sbr.rel (0) target = $region25
  $region24: #{gcn_spa_forward.1} parent=0 // pred_region
    _
  $region25: #{gcn_spa_forward.1} parent=0 // pred_fallthru
    _
  // Predicated region
  $region26: #{gcn_spa_forward.1} parent=0 // pred_check
    _
  $region27: #{gcn_spa_forward.1} parent=0 // pred_check_branch
    %25 = sbr.rel (0) target = $region29
  $region28: #{gcn_spa_forward.1} parent=0 // pred_region
    _
  $region29: #{gcn_spa_forward.1} parent=0 // pred_fallthru
    _
  %v26 = vld [vmem:[%s0] sm:$0xff]
  %v27 = vld [vmem:[%s0 + $0x8] sm:$0xff]
  %v28 = vld [vmem:[%s0 + $0x10] sm:$0xff]
  %v29 = vld [vmem:[%s0 + $0x18] sm:$0xff]
  %v30 = vld [vmem:[%s1] sm:$0xff]
  %v31 = vld [vmem:[%s1 + $0x8] sm:$0xff]
  %v32 = vld [vmem:[%s1 + $0x10] sm:$0xff]
  %v33 = vld [vmem:[%s1 + $0x18] sm:$0xff]
  %v34 = vld [vmem:[%s1 + $0x20] sm:$0xff]
  %v35 = vld [vmem:[%s1 + $0x28] sm:$0xff]
  %v36 = vld [vmem:[%s1 + $0x30] sm:$0xff]
  %v37 = vld [vmem:[%s1 + $0x38] sm:$0xff]
  %v38 = vld [vmem:[%s1 + $0x40] sm:$0xff]
  %v39 = vld [vmem:[%s1 + $0x48] sm:$0xff]
  %v40 = vld [vmem:[%s1 + $0x50] sm:$0xff]
  %v41 = vld [vmem:[%s1 + $0x58] sm:$0xff]
  %v42 = vld [vmem:[%s1 + $0x60] sm:$0xff]
  %v43 = vld [vmem:[%s1 + $0x68] sm:$0xff]
  %v44 = vld [vmem:[%s1 + $0x70] sm:$0xff]
  %v45 = vld [vmem:[%s1 + $0x78] sm:$0xff]
  %46 = vmatprep.subr.mxu0 0.0
  %47 = vmatpush1.msra.mxu0 %v30
  %48 = vmatprep.subr.mxu0 0.0
  %49 = vmatpush1.msra.mxu0 %v31
  %50 = vmatprep.subr.mxu0 0.0
  %51 = vmatpush1.msra.mxu0 %v32
  %52 = vmatprep.subr.mxu0 0.0
  %53 = vmatpush1.msra.mxu0 %v33
  %54 = vmatprep.subr.mxu0 0.0
  %55 = vmatpush1.msra.mxu0 %v34
  %56 = vmatprep.subr.mxu0 0.0
  %57 = vmatpush1.msra.mxu0 %v35
  %58 = vmatprep.subr.mxu0 0.0
  %59 = vmatpush1.msra.mxu0 %v36
  %60 = vmatprep.subr.mxu0 0.0
  %61 = vmatpush1.msra.mxu0 %v37
  %62 = vmatprep.subr.mxu0 0.0
  %63 = vmatpush1.msra.mxu0 %v38
  %64 = vmatprep.subr.mxu0 0.0
  %65 = vmatpush1.msra.mxu0 %v39
  %66 = vmatprep.subr.mxu0 0.0
  %67 = vmatpush1.msra.mxu0 %v40
  %68 = vmatprep.subr.mxu0 0.0
  %69 = vmatpush1.msra.mxu0 %v41
  %70 = vmatprep.subr.mxu0 0.0
  %71 = vmatpush1.msra.mxu0 %v42
  %72 = vmatprep.subr.mxu0 0.0
  %73 = vmatpush1.msra.mxu0 %v43
  %74 = vmatprep.subr.mxu0 0.0
  %75 = vmatpush1.msra.mxu0 %v44
  %76 = vmatprep.subr.mxu0 0.0
  %77 = vmatpush1.msra.mxu0 %v45
  %78 = vmatprep.subr.mxu0 0.0
  %79 = vmatpush1.msra.mxu0 0.0
  %80 = vmatprep.subr.mxu0 0.0
  %81 = vmatpush1.msra.mxu0 0.0
  %82 = vmatprep.subr.mxu0 0.0
  %83 = vmatpush1.msra.mxu0 0.0
  %84 = vmatprep.subr.mxu0 0.0
  %85 = vmatpush1.msra.mxu0 0.0
  %86 = vmatprep.subr.mxu0 0.0
  %87 = vmatpush1.msra.mxu0 0.0
  %88 = vmatprep.subr.mxu0 0.0
  %89 = vmatpush1.msra.mxu0 0.0
  %90 = vmatprep.subr.mxu0 0.0
  %91 = vmatpush1.msra.mxu0 0.0
  %92 = vmatprep.subr.mxu0 0.0
  %93 = vmatpush1.msra.mxu0 0.0
  %94 = vmatprep.subr.mxu0 0.0
  %95 = vmatpush1.msra.mxu0 0.0
  %96 = vmatprep.subr.mxu0 0.0
  %97 = vmatpush1.msra.mxu0 0.0
  %98 = vmatprep.subr.mxu0 0.0
  %99 = vmatpush1.msra.mxu0 0.0
  %100 = vmatprep.subr.mxu0 0.0
  %101 = vmatpush1.msra.mxu0 0.0
  %102 = vmatprep.subr.mxu0 0.0
  %103 = vmatpush1.msra.mxu0 0.0
  %104 = vmatprep.subr.mxu0 0.0
  %105 = vmatpush1.msra.mxu0 0.0
  %106 = vmatprep.subr.mxu0 0.0
  %107 = vmatpush1.msra.mxu0 0.0
  %108 = vmatprep.subr.mxu0 0.0
  %109 = vmatpush1.msra.mxu0 0.0
  %110 = vmatprep.mubr.f32.mxu0 0.0
  %111 = vmatmul.mubr.f32.gmra.mrb[0].mxu0 %v26
  %v112 = vpop.f32.mrb[0].mxu0
  %v113 = vadd.f32 0.0, %v112
  %v114 = vpop.f32.mrb[0].mxu0
  %115 = vmatprep.mubr.f32.mxu0 0.0
  %116 = vmatmul.mubr.f32.gmra.mrb[0].mxu0 %v27
  %v117 = vpop.f32.mrb[0].mxu0
  %v118 = vadd.f32 0.0, %v117
  %v119 = vpop.f32.mrb[0].mxu0
  %120 = vmatprep.mubr.f32.mxu0 0.0
  %121 = vmatmul.mubr.f32.gmra.mrb[0].mxu0 %v28
  %v122 = vpop.f32.mrb[0].mxu0
  %v123 = vadd.f32 0.0, %v122
  %v124 = vpop.f32.mrb[0].mxu0
  %125 = vmatprep.mubr.f32.mxu0 0.0
  %126 = vmatmul.mubr.f32.gmra.mrb[0].mxu0 %v29
  %v127 = vpop.f32.mrb[0].mxu0
  %v128 = vadd.f32 0.0, %v127
  %v129 = vpop.f32.mrb[0].mxu0
  %130 = vdwg.mxu0
  %v131 = vld [vmem:[%s2] sm:$0xff]
  %v132 = vld [vmem:[%s2 + $0x8] sm:$0xff]
  %v133 = vld [vmem:[%s2 + $0x10] sm:$0xff]
  %v134 = vld [vmem:[%s2 + $0x18] sm:$0xff]
  %v135 = vld [vmem:[%s2 + $0x20] sm:$0xff]
  %v136 = vld [vmem:[%s2 + $0x28] sm:$0xff]
  %v137 = vld [vmem:[%s2 + $0x30] sm:$0xff]
  %v138 = vld [vmem:[%s2 + $0x38] sm:$0xff]
  %v139 = vld [vmem:[%s3] sm:$0xff]
  %v140 = vld [vmem:[%s3 + $0x8] sm:$0xff]
  %v141 = vld [vmem:[%s3 + $0x10] sm:$0xff]
  %v142 = vld [vmem:[%s3 + $0x18] sm:$0xff]
  %v143 = vld [vmem:[%s3 + $0x20] sm:$0xff]
  %v144 = vld [vmem:[%s3 + $0x28] sm:$0xff]
  %v145 = vld [vmem:[%s3 + $0x30] sm:$0xff]
  %v146 = vld [vmem:[%s3 + $0x38] sm:$0xff]
  %vm147 = vcmask 261120
  %v149 = vsel %vm147, %v139, 0
  %v152 = vsel %vm147, %v140, 0
  %v155 = vsel %vm147, %v141, 0
  %v158 = vsel %vm147, %v142, 0
  %v161 = vsel %vm147, %v143, 0
  %v164 = vsel %vm147, %v144, 0
  %v167 = vsel %vm147, %v145, 0
  %v170 = vsel %vm147, %v146, 0
  %172 = vmatprep.subr.mxu0 0.0
  %173 = vmatpush1.msra.mxu0 %v26
  %174 = vmatprep.subr.mxu0 0.0
  %175 = vmatpush1.msra.mxu0 %v27
  %176 = vmatprep.subr.mxu0 0.0
  %177 = vmatpush1.msra.mxu0 %v28
  %178 = vmatprep.subr.mxu0 0.0
  %179 = vmatpush1.msra.mxu0 %v29
  %180 = vmatprep.subr.mxu0 0.0
  %181 = vmatpush1.msra.mxu0 0.0
  %182 = vmatprep.subr.mxu0 0.0
  %183 = vmatpush1.msra.mxu0 0.0
  %184 = vmatprep.subr.mxu0 0.0
  %185 = vmatpush1.msra.mxu0 0.0
  %186 = vmatprep.subr.mxu0 0.0
  %187 = vmatpush1.msra.mxu0 0.0
  %188 = vmatprep.subr.mxu0 0.0
  %189 = vmatpush1.msra.mxu0 0.0
  %190 = vmatprep.subr.mxu0 0.0
  %191 = vmatpush1.msra.mxu0 0.0
  %192 = vmatprep.subr.mxu0 0.0
  %193 = vmatpush1.msra.mxu0 0.0
  %194 = vmatprep.subr.mxu0 0.0
  %195 = vmatpush1.msra.mxu0 0.0
  %196 = vmatprep.subr.mxu0 0.0
  %197 = vmatpush1.msra.mxu0 0.0
  %198 = vmatprep.subr.mxu0 0.0
  %199 = vmatpush1.msra.mxu0 0.0
  %200 = vmatprep.subr.mxu0 0.0
  %201 = vmatpush1.msra.mxu0 0.0
  %202 = vmatprep.subr.mxu0 0.0
  %203 = vmatpush1.msra.mxu0 0.0
  %204 = vmatprep.subr.mxu0 0.0
  %205 = vmatpush1.msra.mxu0 0.0
  %206 = vmatprep.subr.mxu0 0.0
  %207 = vmatpush1.msra.mxu0 0.0
  %208 = vmatprep.subr.mxu0 0.0
  %209 = vmatpush1.msra.mxu0 0.0
  %210 = vmatprep.subr.mxu0 0.0
  %211 = vmatpush1.msra.mxu0 0.0
  %212 = vmatprep.subr.mxu0 0.0
  %213 = vmatpush1.msra.mxu0 0.0
  %214 = vmatprep.subr.mxu0 0.0
  %215 = vmatpush1.msra.mxu0 0.0
  %216 = vmatprep.subr.mxu0 0.0
  %217 = vmatpush1.msra.mxu0 0.0
  %218 = vmatprep.subr.mxu0 0.0
  %219 = vmatpush1.msra.mxu0 0.0
  %220 = vmatprep.subr.mxu0 0.0
  %221 = vmatpush1.msra.mxu0 0.0
  %222 = vmatprep.subr.mxu0 0.0
  %223 = vmatpush1.msra.mxu0 0.0
  %224 = vmatprep.subr.mxu0 0.0
  %225 = vmatpush1.msra.mxu0 0.0
  %226 = vmatprep.subr.mxu0 0.0
  %227 = vmatpush1.msra.mxu0 0.0
  %228 = vmatprep.subr.mxu0 0.0
  %229 = vmatpush1.msra.mxu0 0.0
  %230 = vmatprep.subr.mxu0 0.0
  %231 = vmatpush1.msra.mxu0 0.0
  %232 = vmatprep.subr.mxu0 0.0
  %233 = vmatpush1.msra.mxu0 0.0
  %234 = vmatprep.subr.mxu0 0.0
  %235 = vmatpush1.msra.mxu0 0.0
  %236 = vmatprep.mubr.f32.mxu0 0.0
  %237 = vmatmul.mubr.f32.gmra.mrb[0].mxu0 %v149
  %v238 = vpop.f32.mrb[0].mxu0
  %v239 = vadd.f32 0.0, %v238
  %v240 = vpop.f32.mrb[0].mxu0
  %241 = vmatprep.mubr.f32.mxu0 0.0
  %242 = vmatmul.mubr.f32.gmra.mrb[0].mxu0 %v152
  %v243 = vpop.f32.mrb[0].mxu0
  %v244 = vadd.f32 0.0, %v243
  %v245 = vpop.f32.mrb[0].mxu0
  %246 = vmatprep.mubr.f32.mxu0 0.0
  %247 = vmatmul.mubr.f32.gmra.mrb[0].mxu0 %v155
  %v248 = vpop.f32.mrb[0].mxu0
  %v249 = vadd.f32 0.0, %v248
  %v250 = vpop.f32.mrb[0].mxu0
  %251 = vmatprep.mubr.f32.mxu0 0.0
  %252 = vmatmul.mubr.f32.gmra.mrb[0].mxu0 %v158
  %v253 = vpop.f32.mrb[0].mxu0
  %v254 = vadd.f32 0.0, %v253
  %v255 = vpop.f32.mrb[0].mxu0
  %256 = vmatprep.mubr.f32.mxu0 0.0
  %257 = vmatmul.mubr.f32.gmra.mrb[0].mxu0 %v161
  %v258 = vpop.f32.mrb[0].mxu0
  %v259 = vadd.f32 0.0, %v258
  %v260 = vpop.f32.mrb[0].mxu0
  %261 = vmatprep.mubr.f32.mxu0 0.0
  %262 = vmatmul.mubr.f32.gmra.mrb[0].mxu0 %v164
  %v263 = vpop.f32.mrb[0].mxu0
  %v264 = vadd.f32 0.0, %v263
  %v265 = vpop.f32.mrb[0].mxu0
  %266 = vmatprep.mubr.f32.mxu0 0.0
  %267 = vmatmul.mubr.f32.gmra.mrb[0].mxu0 %v167
  %v268 = vpop.f32.mrb[0].mxu0
  %v269 = vadd.f32 0.0, %v268
  %v270 = vpop.f32.mrb[0].mxu0
  %271 = vmatprep.mubr.f32.mxu0 0.0
  %272 = vmatmul.mubr.f32.gmra.mrb[0].mxu0 %v170
  %v273 = vpop.f32.mrb[0].mxu0
  %v274 = vadd.f32 0.0, %v273
  %v275 = vpop.f32.mrb[0].mxu0
  %276 = vdwg.mxu0
  %v278 = vsel %vm147, %v131, 0
  %v281 = vsel %vm147, %v132, 0
  %v284 = vsel %vm147, %v133, 0
  %v287 = vsel %vm147, %v134, 0
  %v290 = vsel %vm147, %v135, 0
  %v293 = vsel %vm147, %v136, 0
  %v296 = vsel %vm147, %v137, 0
  %v299 = vsel %vm147, %v138, 0
  %301 = vmatprep.subr.mxu0 0.0
  %302 = vmatpush1.msra.mxu0 %v113
  %303 = vmatprep.subr.mxu0 0.0
  %304 = vmatpush1.msra.mxu0 %v118
  %305 = vmatprep.subr.mxu0 0.0
  %306 = vmatpush1.msra.mxu0 %v123
  %307 = vmatprep.subr.mxu0 0.0
  %308 = vmatpush1.msra.mxu0 %v128
  %309 = vmatprep.subr.mxu0 0.0
  %310 = vmatpush1.msra.mxu0 0.0
  %311 = vmatprep.subr.mxu0 0.0
  %312 = vmatpush1.msra.mxu0 0.0
  %313 = vmatprep.subr.mxu0 0.0
  %314 = vmatpush1.msra.mxu0 0.0
  %315 = vmatprep.subr.mxu0 0.0
  %316 = vmatpush1.msra.mxu0 0.0
  %317 = vmatprep.subr.mxu0 0.0
  %318 = vmatpush1.msra.mxu0 0.0
  %319 = vmatprep.subr.mxu0 0.0
  %320 = vmatpush1.msra.mxu0 0.0
  %321 = vmatprep.subr.mxu0 0.0
  %322 = vmatpush1.msra.mxu0 0.0
  %323 = vmatprep.subr.mxu0 0.0
  %324 = vmatpush1.msra.mxu0 0.0
  %325 = vmatprep.subr.mxu0 0.0
  %326 = vmatpush1.msra.mxu0 0.0
  %327 = vmatprep.subr.mxu0 0.0
  %328 = vmatpush1.msra.mxu0 0.0
  %329 = vmatprep.subr.mxu0 0.0
  %330 = vmatpush1.msra.mxu0 0.0
  %331 = vmatprep.subr.mxu0 0.0
  %332 = vmatpush1.msra.mxu0 0.0
  %333 = vmatprep.subr.mxu0 0.0
  %334 = vmatpush1.msra.mxu0 0.0
  %335 = vmatprep.subr.mxu0 0.0
  %336 = vmatpush1.msra.mxu0 0.0
  %337 = vmatprep.subr.mxu0 0.0
  %338 = vmatpush1.msra.mxu0 0.0
  %339 = vmatprep.subr.mxu0 0.0
  %340 = vmatpush1.msra.mxu0 0.0
  %341 = vmatprep.subr.mxu0 0.0
  %342 = vmatpush1.msra.mxu0 0.0
  %343 = vmatprep.subr.mxu0 0.0
  %344 = vmatpush1.msra.mxu0 0.0
  %345 = vmatprep.subr.mxu0 0.0
  %346 = vmatpush1.msra.mxu0 0.0
  %347 = vmatprep.subr.mxu0 0.0
  %348 = vmatpush1.msra.mxu0 0.0
  %349 = vmatprep.subr.mxu0 0.0
  %350 = vmatpush1.msra.mxu0 0.0
  %351 = vmatprep.subr.mxu0 0.0
  %352 = vmatpush1.msra.mxu0 0.0
  %353 = vmatprep.subr.mxu0 0.0
  %354 = vmatpush1.msra.mxu0 0.0
  %355 = vmatprep.subr.mxu0 0.0
  %356 = vmatpush1.msra.mxu0 0.0
  %357 = vmatprep.subr.mxu0 0.0
  %358 = vmatpush1.msra.mxu0 0.0
  %359 = vmatprep.subr.mxu0 0.0
  %360 = vmatpush1.msra.mxu0 0.0
  %361 = vmatprep.subr.mxu0 0.0
  %362 = vmatpush1.msra.mxu0 0.0
  %363 = vmatprep.subr.mxu0 0.0
  %364 = vmatpush1.msra.mxu0 0.0
  %365 = vmatprep.mubr.f32.mxu0 0.0
  %366 = vmatmul.mubr.f32.gmra.mrb[0].mxu0 %v278
  %v367 = vpop.f32.mrb[0].mxu0
  %v368 = vadd.f32 %v239, %v367
  %v369 = vpop.f32.mrb[0].mxu0
  %370 = vmatprep.mubr.f32.mxu0 0.0
  %371 = vmatmul.mubr.f32.gmra.mrb[0].mxu0 %v281
  %v372 = vpop.f32.mrb[0].mxu0
  %v373 = vadd.f32 %v244, %v372
  %v374 = vpop.f32.mrb[0].mxu0
  %375 = vmatprep.mubr.f32.mxu0 0.0
  %376 = vmatmul.mubr.f32.gmra.mrb[0].mxu0 %v284
  %v377 = vpop.f32.mrb[0].mxu0
  %v378 = vadd.f32 %v249, %v377
  %v379 = vpop.f32.mrb[0].mxu0
  %380 = vmatprep.mubr.f32.mxu0 0.0
  %381 = vmatmul.mubr.f32.gmra.mrb[0].mxu0 %v287
  %v382 = vpop.f32.mrb[0].mxu0
  %v383 = vadd.f32 %v254, %v382
  %v384 = vpop.f32.mrb[0].mxu0
  %385 = vmatprep.mubr.f32.mxu0 0.0
  %386 = vmatmul.mubr.f32.gmra.mrb[0].mxu0 %v290
  %v387 = vpop.f32.mrb[0].mxu0
  %v388 = vadd.f32 %v259, %v387
  %v389 = vpop.f32.mrb[0].mxu0
  %390 = vmatprep.mubr.f32.mxu0 0.0
  %391 = vmatmul.mubr.f32.gmra.mrb[0].mxu0 %v293
  %v392 = vpop.f32.mrb[0].mxu0
  %v393 = vadd.f32 %v264, %v392
  %v394 = vpop.f32.mrb[0].mxu0
  %395 = vmatprep.mubr.f32.mxu0 0.0
  %396 = vmatmul.mubr.f32.gmra.mrb[0].mxu0 %v296
  %v397 = vpop.f32.mrb[0].mxu0
  %v398 = vadd.f32 %v269, %v397
  %v399 = vpop.f32.mrb[0].mxu0
  %400 = vmatprep.mubr.f32.mxu0 0.0
  %401 = vmatmul.mubr.f32.gmra.mrb[0].mxu0 %v299
  %v402 = vpop.f32.mrb[0].mxu0
  %v403 = vadd.f32 %v274, %v402
  %v404 = vpop.f32.mrb[0].mxu0
  %405 = vdwg.mxu0
  %v406 = vld [vmem:[%s4] sm:$0xff]
  %v407 = vld [vmem:[%s4 + $0x8] sm:$0xff]
  %v408 = vld [vmem:[%s4 + $0x10] sm:$0xff]
  %v409 = vld [vmem:[%s4 + $0x18] sm:$0xff]
  %v410 = vld [vmem:[%s4 + $0x20] sm:$0xff]
  %v411 = vld [vmem:[%s4 + $0x28] sm:$0xff]
  %v412 = vld [vmem:[%s4 + $0x30] sm:$0xff]
  %v413 = vld [vmem:[%s4 + $0x38] sm:$0xff]
  %415 = vset.pattern.permute.xlu0 0
  %416 = vperm.xlu0 %415, %v406
  %v417 = vpop.permute.xlu0 %416
  %420 = vset.pattern.permute.xlu0 0
  %421 = vperm.xlu0 %420, %v407
  %v422 = vpop.permute.xlu0 %421
  %425 = vset.pattern.permute.xlu0 0
  %426 = vperm.xlu0 %425, %v408
  %v427 = vpop.permute.xlu0 %426
  %430 = vset.pattern.permute.xlu0 0
  %431 = vperm.xlu0 %430, %v409
  %v432 = vpop.permute.xlu0 %431
  %435 = vset.pattern.permute.xlu0 0
  %436 = vperm.xlu0 %435, %v410
  %v437 = vpop.permute.xlu0 %436
  %440 = vset.pattern.permute.xlu0 0
  %441 = vperm.xlu0 %440, %v411
  %v442 = vpop.permute.xlu0 %441
  %445 = vset.pattern.permute.xlu0 0
  %446 = vperm.xlu0 %445, %v412
  %v447 = vpop.permute.xlu0 %446
  %450 = vset.pattern.permute.xlu0 0
  %451 = vperm.xlu0 %450, %v413
  %v452 = vpop.permute.xlu0 %451
  %v454 = vadd.f32 %v368, %v417
  %v455 = vadd.f32 %v373, %v422
  %v456 = vadd.f32 %v378, %v427
  %v457 = vadd.f32 %v383, %v432
  %v458 = vadd.f32 %v388, %v437
  %v459 = vadd.f32 %v393, %v442
  %v460 = vadd.f32 %v398, %v447
  %v461 = vadd.f32 %v403, %v452
  %462 = vadd.xlane.f32.xlu0 %v454
  %v463 = vpop.xlane.xlu0 %462
  %464 = vadd.xlane.f32.xlu0 %v455
  %v465 = vpop.xlane.xlu0 %464
  %466 = vadd.xlane.f32.xlu0 %v456
  %v467 = vpop.xlane.xlu0 %466
  %468 = vadd.xlane.f32.xlu0 %v457
  %v469 = vpop.xlane.xlu0 %468
  %470 = vadd.xlane.f32.xlu0 %v458
  %v471 = vpop.xlane.xlu0 %470
  %472 = vadd.xlane.f32.xlu0 %v459
  %v473 = vpop.xlane.xlu0 %472
  %474 = vadd.xlane.f32.xlu0 %v460
  %v475 = vpop.xlane.xlu0 %474
  %476 = vadd.xlane.f32.xlu0 %v461
  %v477 = vpop.xlane.xlu0 %476
  %v478 = vmul.f32 %v463, 0.0078125
  %v479 = vmul.f32 %v465, 0.0078125
  %v480 = vmul.f32 %v467, 0.0078125
  %v481 = vmul.f32 %v469, 0.0078125
  %v482 = vmul.f32 %v471, 0.0078125
  %v483 = vmul.f32 %v473, 0.0078125
  %v484 = vmul.f32 %v475, 0.0078125
  %v485 = vmul.f32 %v477, 0.0078125
  %v486 = vsub.f32 %v454, %v478
  %v487 = vsub.f32 %v455, %v479
  %v488 = vsub.f32 %v456, %v480
  %v489 = vsub.f32 %v457, %v481
  %v490 = vsub.f32 %v458, %v482
  %v491 = vsub.f32 %v459, %v483
  %v492 = vsub.f32 %v460, %v484
  %v493 = vsub.f32 %v461, %v485
  %v494 = vmul.f32 %v486, %v486
  %v495 = vmul.f32 %v487, %v487
  %v496 = vmul.f32 %v488, %v488
  %v497 = vmul.f32 %v489, %v489
  %v498 = vmul.f32 %v490, %v490
  %v499 = vmul.f32 %v491, %v491
  %v500 = vmul.f32 %v492, %v492
  %v501 = vmul.f32 %v493, %v493
  %502 = vadd.xlane.f32.xlu0 %v494
  %v503 = vpop.xlane.xlu0 %502
  %504 = vadd.xlane.f32.xlu0 %v495
  %v505 = vpop.xlane.xlu0 %504
  %506 = vadd.xlane.f32.xlu0 %v496
  %v507 = vpop.xlane.xlu0 %506
  %508 = vadd.xlane.f32.xlu0 %v497
  %v509 = vpop.xlane.xlu0 %508
  %510 = vadd.xlane.f32.xlu0 %v498
  %v511 = vpop.xlane.xlu0 %510
  %512 = vadd.xlane.f32.xlu0 %v499
  %v513 = vpop.xlane.xlu0 %512
  %514 = vadd.xlane.f32.xlu0 %v500
  %v515 = vpop.xlane.xlu0 %514
  %516 = vadd.xlane.f32.xlu0 %v501
  %v517 = vpop.xlane.xlu0 %516
  %v518 = vmul.f32 %v503, 0.0078125
  %v519 = vmul.f32 %v505, 0.0078125
  %v520 = vmul.f32 %v507, 0.0078125
  %v521 = vmul.f32 %v509, 0.0078125
  %v522 = vmul.f32 %v511, 0.0078125
  %v523 = vmul.f32 %v513, 0.0078125
  %v524 = vmul.f32 %v515, 0.0078125
  %v525 = vmul.f32 %v517, 0.0078125
  %v526 = vld [vmem:[%s5] sm:$0xff]
  %v527 = vld [vmem:[%s5 + $0x8] sm:$0xff]
  %v528 = vld [vmem:[%s5 + $0x10] sm:$0xff]
  %v529 = vld [vmem:[%s5 + $0x18] sm:$0xff]
  %v530 = vld [vmem:[%s5 + $0x20] sm:$0xff]
  %v531 = vld [vmem:[%s5 + $0x28] sm:$0xff]
  %v532 = vld [vmem:[%s5 + $0x30] sm:$0xff]
  %v533 = vld [vmem:[%s5 + $0x38] sm:$0xff]
  %v534 = vadd.f32 %v518, 1e-05
  %v535 = vadd.f32 %v519, 1e-05
  %v536 = vadd.f32 %v520, 1e-05
  %v537 = vadd.f32 %v521, 1e-05
  %v538 = vadd.f32 %v522, 1e-05
  %v539 = vadd.f32 %v523, 1e-05
  %v540 = vadd.f32 %v524, 1e-05
  %v541 = vadd.f32 %v525, 1e-05
  %v542 = vrsqrt.pop %v534
  %v543 = vrsqrt.pop %v535
  %v544 = vrsqrt.pop %v536
  %v545 = vrsqrt.pop %v537
  %v546 = vrsqrt.pop %v538
  %v547 = vrsqrt.pop %v539
  %v548 = vrsqrt.pop %v540
  %v549 = vrsqrt.pop %v541
  %v550 = vmul.f32 %v526, %v542
  %v551 = vmul.f32 %v527, %v543
  %v552 = vmul.f32 %v528, %v544
  %v553 = vmul.f32 %v529, %v545
  %v554 = vmul.f32 %v530, %v546
  %v555 = vmul.f32 %v531, %v547
  %v556 = vmul.f32 %v532, %v548
  %v557 = vmul.f32 %v533, %v549
  %559 = vset.pattern.permute.xlu0 0
  %560 = vperm.xlu0 %559, %v550
  %v561 = vpop.permute.xlu0 %560
  %564 = vset.pattern.permute.xlu0 0
  %565 = vperm.xlu0 %564, %v551
  %v566 = vpop.permute.xlu0 %565
  %569 = vset.pattern.permute.xlu0 0
  %570 = vperm.xlu0 %569, %v552
  %v571 = vpop.permute.xlu0 %570
  %574 = vset.pattern.permute.xlu0 0
  %575 = vperm.xlu0 %574, %v553
  %v576 = vpop.permute.xlu0 %575
  %579 = vset.pattern.permute.xlu0 0
  %580 = vperm.xlu0 %579, %v554
  %v581 = vpop.permute.xlu0 %580
  %584 = vset.pattern.permute.xlu0 0
  %585 = vperm.xlu0 %584, %v555
  %v586 = vpop.permute.xlu0 %585
  %589 = vset.pattern.permute.xlu0 0
  %590 = vperm.xlu0 %589, %v556
  %v591 = vpop.permute.xlu0 %590
  %594 = vset.pattern.permute.xlu0 0
  %595 = vperm.xlu0 %594, %v557
  %v596 = vpop.permute.xlu0 %595
  %v598 = vmul.f32 %v486, %v561
  %v599 = vmul.f32 %v487, %v566
  %v600 = vmul.f32 %v488, %v571
  %v601 = vmul.f32 %v489, %v576
  %v602 = vmul.f32 %v490, %v581
  %v603 = vmul.f32 %v491, %v586
  %v604 = vmul.f32 %v492, %v591
  %v605 = vmul.f32 %v493, %v596
  %v606 = vld [vmem:[%s6] sm:$0xff]
  %v607 = vld [vmem:[%s6 + $0x8] sm:$0xff]
  %v608 = vld [vmem:[%s6 + $0x10] sm:$0xff]
  %v609 = vld [vmem:[%s6 + $0x18] sm:$0xff]
  %v610 = vld [vmem:[%s6 + $0x20] sm:$0xff]
  %v611 = vld [vmem:[%s6 + $0x28] sm:$0xff]
  %v612 = vld [vmem:[%s6 + $0x30] sm:$0xff]
  %v613 = vld [vmem:[%s6 + $0x38] sm:$0xff]
  %615 = vset.pattern.permute.xlu0 0
  %616 = vperm.xlu0 %615, %v606
  %v617 = vpop.permute.xlu0 %616
  %620 = vset.pattern.permute.xlu0 0
  %621 = vperm.xlu0 %620, %v607
  %v622 = vpop.permute.xlu0 %621
  %625 = vset.pattern.permute.xlu0 0
  %626 = vperm.xlu0 %625, %v608
  %v627 = vpop.permute.xlu0 %626
  %630 = vset.pattern.permute.xlu0 0
  %631 = vperm.xlu0 %630, %v609
  %v632 = vpop.permute.xlu0 %631
  %635 = vset.pattern.permute.xlu0 0
  %636 = vperm.xlu0 %635, %v610
  %v637 = vpop.permute.xlu0 %636
  %640 = vset.pattern.permute.xlu0 0
  %641 = vperm.xlu0 %640, %v611
  %v642 = vpop.permute.xlu0 %641
  %645 = vset.pattern.permute.xlu0 0
  %646 = vperm.xlu0 %645, %v612
  %v647 = vpop.permute.xlu0 %646
  %650 = vset.pattern.permute.xlu0 0
  %651 = vperm.xlu0 %650, %v613
  %v652 = vpop.permute.xlu0 %651
  %v654 = vadd.f32 %v598, %v617
  %v655 = vadd.f32 %v599, %v622
  %v656 = vadd.f32 %v600, %v627
  %v657 = vadd.f32 %v601, %v632
  %v658 = vadd.f32 %v602, %v637
  %v659 = vadd.f32 %v603, %v642
  %v660 = vadd.f32 %v604, %v647
  %v661 = vadd.f32 %v605, %v652
  %v662 = vmax.f32 %v654, 0.0
  %v663 = vmax.f32 %v655, 0.0
  %v664 = vmax.f32 %v656, 0.0
  %v665 = vmax.f32 %v657, 0.0
  %v666 = vmax.f32 %v658, 0.0
  %v667 = vmax.f32 %v659, 0.0
  %v668 = vmax.f32 %v660, 0.0
  %v669 = vmax.f32 %v661, 0.0
  %670 = vst [vmem:[%s7] sm:$0xff] %v662
  %671 = vst [vmem:[%s7 + $0x8] sm:$0xff] %v663
  %672 = vst [vmem:[%s7 + $0x10] sm:$0xff] %v664
  %673 = vst [vmem:[%s7 + $0x18] sm:$0xff] %v665
  %674 = vst [vmem:[%s7 + $0x20] sm:$0xff] %v666
  %675 = vst [vmem:[%s7 + $0x28] sm:$0xff] %v667
  %676 = vst [vmem:[%s7 + $0x30] sm:$0xff] %v668
  %677 = vst [vmem:[%s7 + $0x38] sm:$0xff] %v669
  // Predicated region
  $region30: #{gcn_spa_forward.1} parent=0 // pred_check
    _
  $region31: #{gcn_spa_forward.1} parent=0 // pred_check_branch
    %679 = sbr.rel (0) target = $region33
  $region32: #{gcn_spa_forward.1} parent=0 // pred_region
    _
  $region33: #{gcn_spa_forward.1} parent=0 // pred_fallthru
    _
  // Predicated region
  $region34: #{gcn_spa_forward.1} parent=0 // pred_check
    _
  $region35: #{gcn_spa_forward.1} parent=0 // pred_check_branch
    %681 = sbr.rel (0) target = $region37
  $region36: #{gcn_spa_forward.1} parent=0 // pred_region
    _
  $region37: #{gcn_spa_forward.1} parent=0 // pred_fallthru
    _

</llo_original>
